<compile_context>
chip_gen: v7x
topology: tpu7x:2x2x1
jax: 0.10.0
libtpu: 0.0.40
codegen_flags: <defaults>
</compile_context>

<pallas_src>
import numpy as np
import jax
import jax.numpy as jnp
from jax.experimental import pallas as pl
from jax.experimental.pallas import tpu as pltpu

SIGMA = 5.0
TRUNCATE = 4.0                       # scipy.ndimage.gaussian_filter default
_LANE = 128
_SUBLANE = 8
_DEFAULT_VMEM_BUDGET = 12 * 1024 * 1024   # single-tile cutoff (safe on v5e/v6e/v7x)
_VMEM_LIMIT_CAP = 32 * 1024 * 1024


def _round_up(x: int, m: int) -> int:
    return ((x + m - 1) // m) * m


def _gaussian_taps(sigma: float, truncate: float = TRUNCATE):
    """Normalized truncated Gaussian taps (host-side, exact scipy weights)."""
    radius = int(truncate * sigma + 0.5)
    x = np.arange(-radius, radius + 1, dtype=np.float64)
    w = np.exp(-0.5 * (x / sigma) ** 2)
    w /= w.sum()
    return radius, w.astype(np.float32)


def _blurred_impulses(centers, length: int, radius: int, taps):
    """(N, length) f32 where row n is the reflect-boundary Gaussian blur of a
    unit impulse at centers[n].  Built analytically (O(N * (2r+1)) scatter) --
    the dense (length, length) operator is never formed."""
    n = centers.shape[0]
    period = 2 * length
    offs = jnp.arange(-radius, radius + 1, dtype=jnp.int32)
    pos = (centers[:, None] + offs[None, :]) % period               # (N, K)
    pos = jnp.where(pos >= length, period - 1 - pos, pos)           # reflect fold
    upd = jnp.broadcast_to(taps[None, :], pos.shape)
    rows = jnp.broadcast_to(jnp.arange(n, dtype=jnp.int32)[:, None], pos.shape)
    return jnp.zeros((n, length), jnp.float32).at[rows, pos].add(upd)


# ----------------------------- Pallas kernels ------------------------------

def _blur_norm_kernel(a_ref, b_ref, out_ref):
    """Single-tile path: rank-N blur + global-max normalization fused.
    Stage through out_ref (VMEM) so the full tile is not held live across
    the XLU reduce."""
    out_ref[...] = jnp.dot(a_ref[...], b_ref[...],
                           preferred_element_type=jnp.float32)
    m = jnp.max(out_ref[...], axis=(0, 1), keepdims=True)           # (1, 1)
    denom = jnp.where(m > 0.0, m, 1.0)
    # approx=False keeps the tight reference tolerance (ULP-level vs divide).
    out_ref[...] = out_ref[...] * pl.reciprocal(denom, approx=False)


def _blur_tilemax_kernel(a_ref, b_ref, out_ref, max_ref):
    """Row-tiled path: rank-N blur of one (tm, Wpad) tile + per-tile max.
    The max rides the XLU (free slot next to MXU/vst) and lets the epilogue
    skip a full-image HBM read."""
    out_ref[...] = jnp.dot(a_ref[...], b_ref[...],
                           preferred_element_type=jnp.float32)
    m = jnp.max(out_ref[...], axis=(0, 1), keepdims=True)           # (1, 1)
    max_ref[...] = jnp.broadcast_to(m, max_ref.shape)


# -------------------------------- wrapper ----------------------------------

def gaussian_centroid_mask(image: jax.Array, boxes: jax.Array,
                           sigma: float = SIGMA, *,
                           vmem_budget_bytes: int = _DEFAULT_VMEM_BUDGET):
    """Equivalent of GaussianCentroidMask.forward.

    Returns (image, target) with target['centroid_gaussian'] of shape (1, H, W).
    """
    _, H, W = image.shape
    boxes = boxes.astype(jnp.float32)
    N = boxes.shape[0]

    # Per-box centroid arithmetic (clamp + trunc-to-int; floor == trunc for >= 0).
    cx = (boxes[:, 2] - boxes[:, 0]) * 0.5 + boxes[:, 0]
    cy = (boxes[:, 3] - boxes[:, 1]) * 0.5 + boxes[:, 1]
    cx_idx = jnp.floor(jnp.clip(cx, 0.0, float(W - 1))).astype(jnp.int32)
    cy_idx = jnp.floor(jnp.clip(cy, 0.0, float(H - 1))).astype(jnp.int32)

    radius, taps_np = _gaussian_taps(sigma)
    taps = jnp.asarray(taps_np)

    # Analytic rank-N factors:  blurred = A @ B.
    # Duplicate centroids still accumulate correctly (sum of rank-1 terms).
    A_cols = _blurred_impulses(cy_idx, H, radius, taps).T            # (H, N)
    B_rows = _blurred_impulses(cx_idx, W, radius, taps)              # (N, W)

    # Padding: K (N) -> multiple of 8 (f32 sublane; store-bound kernel, tiny K
    # is free on the MXU), W -> multiple of 128 (lane-dense unmasked stores).
    n_pad = max(_SUBLANE, _round_up(N, _SUBLANE))
    w_pad = _round_up(W, _LANE)
    h8 = _round_up(H, _SUBLANE)

    # Generous single-tile footprint estimate (double-buffered I/O + temps).
    single_est = 4 * (2 * h8 * n_pad + 2 * n_pad * w_pad + 4 * h8 * w_pad)

    if single_est <= vmem_budget_bytes:
        # ---- single-tile path: one kernel, normalization fused, one HBM write.
        h_pad = h8
        A = jnp.zeros((h_pad, n_pad), jnp.float32).at[:H, :N].set(A_cols)
        B = jnp.zeros((n_pad, w_pad), jnp.float32).at[:N, :W].set(B_rows)
        vmem_limit = int(min(_VMEM_LIMIT_CAP, single_est + (4 << 20)))
        out = pl.pallas_call(
            _blur_norm_kernel,
            out_shape=jax.ShapeDtypeStruct((h_pad, w_pad), jnp.float32),
            grid=(1,),
            in_specs=[
                pl.BlockSpec((h_pad, n_pad), lambda i: (0, 0)),
                pl.BlockSpec((n_pad, w_pad), lambda i: (0, 0)),
            ],
            out_specs=pl.BlockSpec((h_pad, w_pad), lambda i: (0, 0)),
            compiler_params=pltpu.CompilerParams(
                dimension_semantics=("arbitrary",),
                vmem_limit_bytes=vmem_limit),
        )(A, B)
        mask = out[:H, :W]
    else:
        # ---- row-tiled path: adaptive tile height, even tile count (v7x dual
        # TC balance), per-tile max emitted by the kernel.
        tile_budget = max(64 * 1024, min(4 << 20, vmem_budget_bytes // 6))
        rows_target = max(_SUBLANE, tile_budget // (4 * w_pad))
        num_tiles = -(-H // rows_target)
        if num_tiles > 1 and num_tiles % 2 == 1:
            num_tiles += 1                      # even split across v7x's 2 TCs
        tm = _round_up(-(-H // num_tiles), _SUBLANE)
        h_pad = num_tiles * tm

        A = jnp.zeros((h_pad, n_pad), jnp.float32).at[:H, :N].set(A_cols)
        B = jnp.zeros((n_pad, w_pad), jnp.float32).at[:N, :W].set(B_rows)

        tile_est = 4 * (2 * tm * n_pad + 2 * n_pad * w_pad
                        + 4 * tm * w_pad + 2 * _SUBLANE * _LANE)
        vmem_limit = int(min(_VMEM_LIMIT_CAP, tile_est + (4 << 20)))

        out, maxes = pl.pallas_call(
            _blur_tilemax_kernel,
            out_shape=(
                jax.ShapeDtypeStruct((h_pad, w_pad), jnp.float32),
                jax.ShapeDtypeStruct((_SUBLANE, num_tiles * _LANE), jnp.float32),
            ),
            grid=(num_tiles,),
            in_specs=[
                pl.BlockSpec((tm, n_pad), lambda i: (i, 0)),
                # B's block index is grid-invariant (Pallas skips re-DMA).
                # TODO(synk): pipeline_mode=pl.Buffered(1) would also halve its
                # VMEM; omitted to keep the build maximally portable.
                pl.BlockSpec((n_pad, w_pad), lambda i: (0, 0)),
            ],
            out_specs=(
                pl.BlockSpec((tm, w_pad), lambda i: (i, 0)),
                pl.BlockSpec((_SUBLANE, _LANE), lambda i: (0, i)),
            ),
            compiler_params=pltpu.CompilerParams(
                dimension_semantics=("parallel",),
                vmem_limit_bytes=vmem_limit),
        )(A, B)

        # Epilogue: reduce only the tiny per-tile maxes (padded rows/cols are
        # exact zeros and the blur is non-negative, so tile maxes are exact),
        # then a single fused slice + scale pass over the image.
        m = jnp.max(maxes)
        inv = jnp.where(m > 0.0, 1.0 / m, 1.0)
        mask = out[:H, :W] * inv

    target = {"boxes": boxes, "centroid_gaussian": mask.reshape(1, H, W)}
    return image, target


# ------------------------------ reference ----------------------------------

def _gaussian_reflect_matrix(length: int, sigma: float,
                             truncate: float = TRUNCATE) -> np.ndarray:
    """Exact LxL linear operator of scipy gaussian_filter1d (mode='reflect')."""
    radius = int(truncate * sigma + 0.5)
    x = np.arange(-radius, radius + 1, dtype=np.float64)
    w = np.exp(-0.5 * (x / sigma) ** 2)
    w /= w.sum()
    period = 2 * length
    rows = np.arange(length)[:, None]                                   # (L, 1)
    cols = (rows + np.arange(-radius, radius + 1)[None, :]) % period    # (L, K)
    cols = np.where(cols >= length, period - 1 - cols, cols)            # reflect fold
    g = np.zeros((length, length), dtype=np.float64)
    np.add.at(g,
              (np.broadcast_to(rows, cols.shape), cols),
              np.broadcast_to(w, cols.shape))
    return g.astype(np.float32)


def _reference(boxes_np: np.ndarray, H: int, W: int, sigma: float) -> np.ndarray:
    """Pure-numpy reference matching the PyTorch module's math (dense operators)."""
    boxes_np = boxes_np.astype(np.float32)
    mask = np.zeros((H, W), dtype=np.float32)
    for b in boxes_np:
        cx = (b[2] - b[0]) * np.float32(0.5) + b[0]
        cy = (b[3] - b[1]) * np.float32(0.5) + b[1]
        cx = min(max(float(cx), 0.0), W - 1)
        cy = min(max(float(cy), 0.0), H - 1)
        mask[int(cy), int(cx)] += 1.0
    gy = _gaussian_reflect_matrix(H, sigma)
    gx = gy if W == H else _gaussian_reflect_matrix(W, sigma)
    blurred = gy @ mask @ gx.T
    m = blurred.max()
    if m > 0:
        blurred = blurred / m
    return blurred[None].astype(np.float32)


if __name__ == "__main__":
    key = jax.random.PRNGKey(0)

    def _run_case(case_key, C, H, W, N, **kw):
        k_img, k_x, k_y = jax.random.split(case_key, 3)
        image = jax.random.normal(k_img, (C, H, W), dtype=jnp.float32)
        xs = jax.random.uniform(k_x, (N, 2), minval=0.0, maxval=float(W))
        ys = jax.random.uniform(k_y, (N, 2), minval=0.0, maxval=float(H))
        boxes = jnp.stack(
            [jnp.min(xs, 1), jnp.min(ys, 1), jnp.max(xs, 1), jnp.max(ys, 1)],
            axis=1).astype(jnp.float32)

        img_out, target = gaussian_centroid_mask(image, boxes, sigma=SIGMA, **kw)
        mask = jax.block_until_ready(target["centroid_gaussian"])

        assert mask.shape == (1, H, W) and mask.dtype == jnp.float32
        ref = _reference(np.asarray(boxes), H, W, SIGMA)
        np.testing.assert_allclose(np.asarray(mask), ref, rtol=1e-5, atol=1e-5)
        np.testing.assert_allclose(np.asarray(img_out), np.asarray(image))

    k1, k2, k3 = jax.random.split(key, 3)
    _run_case(k1, C=3, H=16, W=16, N=8)       # single-tile (fused normalize), radius > H
    _run_case(k2, C=3, H=320, W=200, N=5)     # medium image now stays single-tile
    # Small VMEM budget override forces the row-tiled, per-tile-max path
    # (odd tile count bumped to even, padded rows in the last tile).
    _run_case(k3, C=3, H=176, W=150, N=6, vmem_budget_bytes=256 * 1024)

    print("KERNEL_OK")
</pallas_src>

<mosaic_0001>
module attributes {stable_mosaic.version = 11 : i64} {
  func.func @_blur_norm_kernel(%arg0: i32, %arg1: memref<16x8xf32, #tpu.memory_space<vmem>>, %arg2: memref<8x128xf32, #tpu.memory_space<vmem>>, %arg3: memref<16x128xf32, #tpu.memory_space<vmem>>) attributes {dimension_semantics = [#tpu.dimension_semantics<arbitrary>], iteration_bounds = array<i64: 1>, scalar_prefetch = 0 : i64, scratch_operands = 0 : i64, tpu.core_type = #tpu.core_type<tc>, window_params = [{pipeline_mode = #tpu.pipeline_mode<synchronous>, transform_indices = @transform_0, window_bounds = array<i64: 16, 8>}, {pipeline_mode = #tpu.pipeline_mode<synchronous>, transform_indices = @transform_1, window_bounds = array<i64: 8, 128>}, {pipeline_mode = #tpu.pipeline_mode<synchronous>, transform_indices = @transform_2, window_bounds = array<i64: 16, 128>}]} {
    %c0 = arith.constant 0 : index
    %c0_0 = arith.constant 0 : index
    %0 = vector.load %arg1[%c0, %c0_0] : memref<16x8xf32, #tpu.memory_space<vmem>>, vector<16x8xf32>
    %c0_1 = arith.constant 0 : index
    %c0_2 = arith.constant 0 : index
    %1 = vector.load %arg2[%c0_1, %c0_2] : memref<8x128xf32, #tpu.memory_space<vmem>>, vector<8x128xf32>
    %cst = arith.constant dense<0.000000e+00> : vector<16x128xf32>
    %2 = tpu.matmul %0, %1, %cst {dimension_numbers = #tpu.dot_dimension_numbers<[1], [0], [0], [1], [0, 0, 1, 1], [], []>} : vector<16x8xf32>, vector<8x128xf32>, vector<16x128xf32> -> vector<16x128xf32>
    %c0_3 = arith.constant 0 : index
    %c0_4 = arith.constant 0 : index
    %3 = vector.load %arg3[%c0_3, %c0_4] : memref<16x128xf32, #tpu.memory_space<vmem>>, vector<16x128xf32>
    tpu.vector_store %arg3[%c0_3, %c0_4], %2 {strides = array<i32>} : memref<16x128xf32, #tpu.memory_space<vmem>>, vector<16x128xf32>,
    %c0_5 = arith.constant 0 : index
    %c0_6 = arith.constant 0 : index
    %4 = vector.load %arg3[%c0_5, %c0_6] : memref<16x128xf32, #tpu.memory_space<vmem>>, vector<16x128xf32>
    %5 = vector.shape_cast %4 : vector<16x128xf32> to vector<1x16x128xf32>
    %cst_7 = arith.constant dense<0xFF800000> : vector<1xf32>
    %6 = vector.multi_reduction <maximumf>, %5, %cst_7 [1, 2] : vector<1x16x128xf32> to vector<1xf32>
    %7 = vector.shape_cast %6 : vector<1xf32> to vector<1x1x1xf32>
    %8 = vector.extract %7[0, 0, 0] : f32 from vector<1x1x1xf32>
    %9 = vector.broadcast %8 : f32 to vector<1x1xf32>
    %cst_8 = arith.constant 0.000000e+00 : f32
    %10 = vector.broadcast %cst_8 : f32 to vector<1x1xf32>
    %11 = arith.cmpf ogt, %9, %10 : vector<1x1xf32>
    %cst_9 = arith.constant 1.000000e+00 : f32
    %12 = vector.broadcast %cst_9 : f32 to vector<1x1xf32>
    %13 = arith.select %11, %9, %12 : vector<1x1xi1>, vector<1x1xf32>
    %c0_10 = arith.constant 0 : index
    %c0_11 = arith.constant 0 : index
    %14 = vector.load %arg3[%c0_10, %c0_11] : memref<16x128xf32, #tpu.memory_space<vmem>>, vector<16x128xf32>
    %15 = tpu.reciprocal %13 : vector<1x1xf32> -> vector<1x1xf32>
    %16 = vector.broadcast %15 : vector<1x1xf32> to vector<16x128xf32>
    %17 = arith.mulf %14, %16 : vector<16x128xf32>
    %c0_12 = arith.constant 0 : index
    %c0_13 = arith.constant 0 : index
    %18 = vector.load %arg3[%c0_12, %c0_13] : memref<16x128xf32, #tpu.memory_space<vmem>>, vector<16x128xf32>
    tpu.vector_store %arg3[%c0_12, %c0_13], %17 {strides = array<i32>} : memref<16x128xf32, #tpu.memory_space<vmem>>, vector<16x128xf32>,
    return
  }
  func.func @transform_0(%arg0: i32) -> (i32, i32) {
    %c0_i32 = arith.constant 0 : i32
    %c0_i32_0 = arith.constant 0 : i32
    %c0_i32_1 = arith.constant 0 : i32
    return %c0_i32, %c0_i32_0 : i32, i32
  }
  func.func @transform_1(%arg0: i32) -> (i32, i32) {
    %c0_i32 = arith.constant 0 : i32
    %c0_i32_0 = arith.constant 0 : i32
    %c0_i32_1 = arith.constant 0 : i32
    return %c0_i32, %c0_i32_0 : i32, i32
  }
  func.func @transform_2(%arg0: i32) -> (i32, i32) {
    %c0_i32 = arith.constant 0 : i32
    %c0_i32_0 = arith.constant 0 : i32
    %c0_i32_1 = arith.constant 0 : i32
    return %c0_i32, %c0_i32_0 : i32, i32
  }
}

</mosaic_0001>

<llo_original>
// kernel: tpu_custom_call.1
$region0: #{tpu_custom_call.1}
  #allocation0 [shape = 'u32[]', space=smem, size = 0x4, offset = 0x4, fixed_abs, tag = 'smem constant byte address 0x4 - core index']
  #allocation1 [shape = 'u32[144,128]{1,0:T(1,128)}', space=vmem, size = 0x12000, scoped, tag = 'internal scratch']
  %s0 = inlined_call_operand.vmem [shape: f32[16,8], index: 0, kind: input, shape index: {}]
  %s1 = inlined_call_operand.vmem [shape: f32[8,128], index: 1, kind: input, shape index: {}]
  %s2 = inlined_call_operand.hbm [shape: f32[16,128], index: 2, kind: output, shape index: {}]
  %s3 = sld [smem:[#allocation0]]
  $region18: #{tpu_custom_call.1} parent=0
    _
  %s5 = ssub.s32 1, %s3
  %s6 = scalar_select 0, %s5, %s3
  $region1: #{tpu_custom_call.1} parent=0
    #allocation2 [shape = 'u8[8192]{0}', space=vmem, size = 0x2000, scoped, tag = 'output window, operand 0, single buffered']
    #allocation3 [shape = 's32[1]{0}', space=sflag, size = 0x4, scoped, tag = 'scoped memory for tpu_custom_call.1']
    %7 = vsyncpa [#allocation3], 0
    // Predicated region
    $region2: #{tpu_custom_call.1} parent=1 // pred_check
      _
    $region3: #{tpu_custom_call.1} parent=1 // pred_check_branch
      %9 = sbr.rel (0) target = $region5
    $region4: #{tpu_custom_call.1} parent=1 // pred_region
      _
    $region5: #{tpu_custom_call.1} parent=1 // pred_fallthru
      _
    // Predicated region
    $region6: #{tpu_custom_call.1} parent=1 // pred_check
      _
    $region7: #{tpu_custom_call.1} parent=1 // pred_check_branch
      %11 = sbr.rel (0) target = $region9
    $region8: #{tpu_custom_call.1} parent=1 // pred_region
      _
    $region9: #{tpu_custom_call.1} parent=1 // pred_fallthru
      _
    %v12 = vld [vmem:[%s0] sm:$0xff]
    %v13 = vld [vmem:[%s0 + $0x8] sm:$0xff]
    %v14 = vld [vmem:[%s1] sm:$0xff]
    %vm15 = vcmask 64512
    %v17 = vsel %vm15, %v12, 0
    %v20 = vsel %vm15, %v13, 0
    %22 = vmatprep.subr.mxu0 0.0
    %23 = vmatpush1.msra.mxu0 %v14
    %24 = vmatprep.subr.mxu0 0.0
    %25 = vmatpush1.msra.mxu0 0.0
    %26 = vmatprep.subr.mxu0 0.0
    %27 = vmatpush1.msra.mxu0 0.0
    %28 = vmatprep.subr.mxu0 0.0
    %29 = vmatpush1.msra.mxu0 0.0
    %30 = vmatprep.subr.mxu0 0.0
    %31 = vmatpush1.msra.mxu0 0.0
    %32 = vmatprep.subr.mxu0 0.0
    %33 = vmatpush1.msra.mxu0 0.0
    %34 = vmatprep.subr.mxu0 0.0
    %35 = vmatpush1.msra.mxu0 0.0
    %36 = vmatprep.subr.mxu0 0.0
    %37 = vmatpush1.msra.mxu0 0.0
    %38 = vmatprep.subr.mxu0 0.0
    %39 = vmatpush1.msra.mxu0 0.0
    %40 = vmatprep.subr.mxu0 0.0
    %41 = vmatpush1.msra.mxu0 0.0
    %42 = vmatprep.subr.mxu0 0.0
    %43 = vmatpush1.msra.mxu0 0.0
    %44 = vmatprep.subr.mxu0 0.0
    %45 = vmatpush1.msra.mxu0 0.0
    %46 = vmatprep.subr.mxu0 0.0
    %47 = vmatpush1.msra.mxu0 0.0
    %48 = vmatprep.subr.mxu0 0.0
    %49 = vmatpush1.msra.mxu0 0.0
    %50 = vmatprep.subr.mxu0 0.0
    %51 = vmatpush1.msra.mxu0 0.0
    %52 = vmatprep.subr.mxu0 0.0
    %53 = vmatpush1.msra.mxu0 0.0
    %54 = vmatprep.subr.mxu0 0.0
    %55 = vmatpush1.msra.mxu0 0.0
    %56 = vmatprep.subr.mxu0 0.0
    %57 = vmatpush1.msra.mxu0 0.0
    %58 = vmatprep.subr.mxu0 0.0
    %59 = vmatpush1.msra.mxu0 0.0
    %60 = vmatprep.subr.mxu0 0.0
    %61 = vmatpush1.msra.mxu0 0.0
    %62 = vmatprep.subr.mxu0 0.0
    %63 = vmatpush1.msra.mxu0 0.0
    %64 = vmatprep.subr.mxu0 0.0
    %65 = vmatpush1.msra.mxu0 0.0
    %66 = vmatprep.subr.mxu0 0.0
    %67 = vmatpush1.msra.mxu0 0.0
    %68 = vmatprep.subr.mxu0 0.0
    %69 = vmatpush1.msra.mxu0 0.0
    %70 = vmatprep.subr.mxu0 0.0
    %71 = vmatpush1.msra.mxu0 0.0
    %72 = vmatprep.subr.mxu0 0.0
    %73 = vmatpush1.msra.mxu0 0.0
    %74 = vmatprep.subr.mxu0 0.0
    %75 = vmatpush1.msra.mxu0 0.0
    %76 = vmatprep.subr.mxu0 0.0
    %77 = vmatpush1.msra.mxu0 0.0
    %78 = vmatprep.subr.mxu0 0.0
    %79 = vmatpush1.msra.mxu0 0.0
    %80 = vmatprep.subr.mxu0 0.0
    %81 = vmatpush1.msra.mxu0 0.0
    %82 = vmatprep.subr.mxu0 0.0
    %83 = vmatpush1.msra.mxu0 0.0
    %84 = vmatprep.subr.mxu0 0.0
    %85 = vmatpush1.msra.mxu0 0.0
    %86 = vmatprep.mubr.f32.mxu0 0.0
    %87 = vmatmul.mubr.f32.gmra.mrb[0].mxu0 %v17
    %v88 = vpop.f32.mrb[0].mxu0
    %v89 = vadd.f32 0.0, %v88
    %v90 = vpop.f32.mrb[0].mxu0
    %91 = vmatprep.mubr.f32.mxu0 0.0
    %92 = vmatmul.mubr.f32.gmra.mrb[0].mxu0 %v20
    %v93 = vpop.f32.mrb[0].mxu0
    %v94 = vadd.f32 0.0, %v93
    %v95 = vpop.f32.mrb[0].mxu0
    %96 = vdwg.mxu0
    %97 = vst [vmem:[#allocation2] sm:$0xff] %v89
    %98 = vst [vmem:[#allocation2 + $0x8] sm:$0xff] %v94
    %v99 = vld [vmem:[#allocation2] sm:$0xff]
    %v100 = vld [vmem:[#allocation2 + $0x8] sm:$0xff]
    %v101 = vmax.f32 %v99, %v100
    %102 = vmax.xlane.f32.xlu0 %v101
    %v103 = vpop.xlane.xlu0 %102
    %v104 = vrot.slane %v103, 4
    %v105 = vmax.f32 %v103, %v104
    %v106 = vrot.slane %v105, 2
    %v107 = vmax.f32 %v105, %v106
    %v108 = vrot.slane %v107, 1
    %v109 = vmax.f32 %v107, %v108
    %s110 = vtos %v109
    %v111 = vstv %s110
    %vm112 = vcmp.gt.f32.partialorder %v111, 0.0
    %v113 = vsel %vm112, %v111, 1.0
    %v114 = vrcp.pop %v113
    %v115 = vmul.f32 %v99, %v114
    %v116 = vmul.f32 %v100, %v114
    %117 = vst [vmem:[#allocation2] sm:$0xff] %v115
    %118 = vst [vmem:[#allocation2 + $0x8] sm:$0xff] %v116
    // Predicated region
    $region10: #{tpu_custom_call.1} parent=1 // pred_check
      _
    $region11: #{tpu_custom_call.1} parent=1 // pred_check_branch
      %120 = sbr.rel (0) target = $region13
    $region12: #{tpu_custom_call.1} parent=1 // pred_region
      %s122 = ssub.s32 256, 256
      %123 = vsyncadd [#allocation3], %s122
      %s124 = sshll.u32 [#allocation2], 4
      %s125 = int_to_ptr.vmem [resolvable:$true] %s124
      %130 = dma.vmem_to_hbm [thread:$0]  %s125, 256, %s2, [#allocation3], 128, 128, 8
    $region13: #{tpu_custom_call.1} parent=1 // pred_fallthru
      _
    // Predicated region
    $region14: #{tpu_custom_call.1} parent=1 // pred_check
      _
    $region15: #{tpu_custom_call.1} parent=1 // pred_check_branch
      %132 = sbr.rel (0) target = $region17
    $region16: #{tpu_custom_call.1} parent=1 // pred_region
      %133 = dma.done [#allocation3], 256
    $region17: #{tpu_custom_call.1} parent=1 // pred_fallthru
      _
    %134 = vsyncpa [#allocation3], 1

</llo_original>
